<compile_context>
chip_gen: v6e
topology: v6e:2x2x1
jax: 0.10.0
libtpu: 0.0.40
codegen_flags: <defaults>
</compile_context>

<pallas_src>
import functools

import jax
import jax.numpy as jnp
from jax.experimental import pallas as pl
from jax.experimental.pallas import tpu as pltpu


# ---------------------------------------------------------------------------
# Kernels
# ---------------------------------------------------------------------------
def _matmul_kernel_single_k(x_ref, w_ref, o_ref):
    """Single K tile: o = x @ w on the MXU. No scratch, no init/finalize gates."""
    o_ref[...] = jnp.dot(
        x_ref[...], w_ref[...], preferred_element_type=jnp.float32
    ).astype(o_ref.dtype)


def _make_matmul_kernel_acc(K, tk, needs_mask):
    """K-tiled matmul accumulating directly into the resident f32 output block."""

    def kernel(x_ref, w_ref, o_ref):
        k = pl.program_id(2)

        @pl.when(k == 0)
        def _():
            o_ref[...] = jnp.zeros_like(o_ref)

        x = x_ref[...]
        w = w_ref[...]
        if needs_mask:
            # Fallback path only (K not covered by an aligned divisor): zero the
            # out-of-range K columns of x AND rows of w so stale VMEM (possibly
            # NaN/Inf bit patterns) cannot leak into the accumulation.
            valid = K - k * tk
            col = jax.lax.broadcasted_iota(jnp.int32, x.shape, dimension=1)
            row = jax.lax.broadcasted_iota(jnp.int32, w.shape, dimension=0)
            x = jnp.where(col < valid, x, jnp.zeros_like(x))
            w = jnp.where(row < valid, w, jnp.zeros_like(w))

        o_ref[...] += jnp.dot(x, w, preferred_element_type=jnp.float32)

    return kernel


# ---------------------------------------------------------------------------
# Hardware / tile selection helpers
# ---------------------------------------------------------------------------
def _tpu_topology():
    """Best-effort (vmem_capacity_bytes, tensorcores_per_chip)."""
    vmem_bytes = 64 << 20  # conservative default (v7x per-TC VMEM)
    try:
        vmem_bytes = int(pltpu.get_tpu_info().vmem_capacity_bytes)
    except Exception:
        pass
    tensorcores = 1  # conservative default: never split for a phantom 2nd core
    try:
        kind = jax.devices()[0].device_kind.lower()
        single_tc = (
            "v5e" in kind or "v5 lite" in kind or "v5lite" in kind
            or "v6e" in kind or "v6 lite" in kind or "v6lite" in kind
        )
        multi_tc = ("v4" in kind) or ("v5p" in kind) or ("v7" in kind)
        if multi_tc and not single_tc:
            tensorcores = 2
    except Exception:
        pass
    return vmem_bytes, tensorcores


def _choose_tk(K, tk_max):
    """Pick tk that divides K whenever possible (no padding, no tail garbage)."""
    if K <= tk_max:
        return K, False  # single full-extent K tile ((8,128) rule waived)
    # Largest divisor of K that is a multiple of 128 (lane dim of the x block).
    for d in range(tk_max, 127, -128):
        if K % d == 0:
            return d, False
    # No aligned divisor: keep an aligned tk and mask the tail tile in-kernel.
    return tk_max, True


def _select_tiles(M, N, K, vmem_bytes):
    big_vmem = vmem_bytes >= (100 << 20)  # v5e/v6e (128 MiB) vs v7x (64 MiB/TC)
    if M <= 128:
        # GEMV-like small batch: purely HBM-bound on streaming W.
        tm = M
        tn = min(1024, N)
        tk_max = 1024
    else:
        tm = min(512, M)
        tn = min(1024 if big_vmem else 512, N)
        tk_max = 1024
    tk, needs_mask = _choose_tk(K, tk_max)
    return tm, tn, tk, needs_mask


def _maybe_split_for_megacore(M, N, tm, tn, tensorcores):
    """Only on multi-TensorCore chips: ensure >= 2 parallel (i, j) blocks."""
    if tensorcores < 2:
        return tm, tn
    while (pl.cdiv(M, tm) * pl.cdiv(N, tn)) < tensorcores:
        if tn >= 256 and (tn // 2) % 128 == 0 and N > tn // 2:
            tn //= 2
        elif tm >= 16 and (tm // 2) % 8 == 0 and M > tm // 2:
            tm //= 2
        else:
            break
    return tm, tn


# ---------------------------------------------------------------------------
# Forward wrapper
# ---------------------------------------------------------------------------
@functools.partial(jax.jit, static_argnames=("compute_dtype",))
def hebbian_forward(x, synaptic_weights, *, compute_dtype=None):
    """Pallas implementation of HebbianLearning.forward: x @ synaptic_weights."""
    M, K = x.shape
    K2, N = synaptic_weights.shape
    assert K == K2, "input_size mismatch between x and synaptic_weights"

    if compute_dtype is not None:
        x = x.astype(compute_dtype)
        synaptic_weights = synaptic_weights.astype(compute_dtype)
    itemsize = jnp.dtype(x.dtype).itemsize

    vmem_bytes, tensorcores = _tpu_topology()
    tm, tn, tk, needs_mask = _select_tiles(M, N, K, vmem_bytes)
    tm, tn = _maybe_split_for_megacore(M, N, tm, tn, tensorcores)

    grid_m = pl.cdiv(M, tm)
    grid_n = pl.cdiv(N, tn)
    grid_k = pl.cdiv(K, tk)

    # Account for tiling re-reads: x is streamed grid_n times, W grid_m times.
    cost = pl.CostEstimate(
        flops=2 * M * N * K,
        transcendentals=0,
        bytes_accessed=itemsize * (M * K * grid_n + K * N * grid_m) + 4 * M * N,
    )

    # Deeper buffering on the dominant weight stream for small-batch GEMV calls.
    use_deep_w = (M <= 128) and (grid_m * grid_n * grid_k >= 3) and hasattr(pl, "Buffered")
    w_bufs = 3 if use_deep_w else 2

    def _make_w_spec(index_map):
        if use_deep_w:
            try:
                return pl.BlockSpec((tk, tn), index_map, pipeline_mode=pl.Buffered(3))
            except TypeError:  # older jax without pipeline_mode kwarg
                pass
        return pl.BlockSpec((tk, tn), index_map)

    if grid_k == 1:
        # Whole reduction in one K tile: no accumulation gates, 2-D parallel grid.
        grid = (grid_m, grid_n)
        in_specs = [
            pl.BlockSpec((tm, tk), lambda i, j: (i, 0)),
            _make_w_spec(lambda i, j: (0, j)),
        ]
        out_specs = pl.BlockSpec((tm, tn), lambda i, j: (i, j))
        kernel = _matmul_kernel_single_k
        dim_sem = ("parallel", "parallel")
    else:
        # K-tiled: accumulate directly into the resident f32 output block.
        grid = (grid_m, grid_n, grid_k)
        in_specs = [
            pl.BlockSpec((tm, tk), lambda i, j, k: (i, k)),
            _make_w_spec(lambda i, j, k: (k, j)),
        ]
        out_specs = pl.BlockSpec((tm, tn), lambda i, j, k: (i, j))
        kernel = _make_matmul_kernel_acc(K, tk, needs_mask)
        dim_sem = ("parallel", "parallel", "arbitrary")

    # Buffered inputs + resident/double-buffered f32 output, plus headroom.
    vmem_est = (2 * tm * tk + w_bufs * tk * tn) * itemsize + 2 * tm * tn * 4
    vmem_cap = max(vmem_bytes - (16 << 20), 32 << 20)  # leave Mosaic scratch room
    vmem_limit = int(min(max(vmem_est + (8 << 20), 32 << 20), vmem_cap))

    return pl.pallas_call(
        kernel,
        out_shape=jax.ShapeDtypeStruct((M, N), jnp.float32),
        grid_spec=pltpu.PrefetchScalarGridSpec(
            num_scalar_prefetch=0,
            grid=grid,
            in_specs=in_specs,
            out_specs=out_specs,
        ),
        compiler_params=pltpu.CompilerParams(
            dimension_semantics=dim_sem,
            vmem_limit_bytes=vmem_limit,
        ),
        cost_estimate=cost,
    )(x, synaptic_weights)


# ---------------------------------------------------------------------------
# Parameter init (shape parity with the PyTorch module)
# ---------------------------------------------------------------------------
def init_hebbian_params(key, input_size, output_size):
    k_w, k_fc_w, k_fc_b = jax.random.split(key, 3)
    # synaptic_weights ~ torch.randn(input_size, output_size)
    synaptic_weights = jax.random.normal(
        k_w, (input_size, output_size), dtype=jnp.float32
    )
    # fc1 (unused in forward; created only for parity with the module definition)
    bound = 1.0 / jnp.sqrt(jnp.float32(input_size))
    fc1_w = jax.random.uniform(
        k_fc_w, (output_size, input_size), minval=-bound, maxval=bound
    )
    fc1_b = jax.random.uniform(
        k_fc_b, (output_size,), minval=-bound, maxval=bound
    )
    return {"synaptic_weights": synaptic_weights, "fc1_w": fc1_w, "fc1_b": fc1_b}


if __name__ == "__main__":
    key = jax.random.PRNGKey(0)
    k_params, k_x = jax.random.split(key)

    batch = 8
    input_size = 32
    output_size = 32

    params = init_hebbian_params(k_params, input_size, output_size)
    x = jax.random.normal(k_x, (batch, input_size), dtype=jnp.float32)

    out = hebbian_forward(x, params["synaptic_weights"])
    out = jax.block_until_ready(out)

    # Correctness check against the pure-JAX reference of the PyTorch forward.
    ref = x @ params["synaptic_weights"]
    assert out.shape == (batch, output_size)
    assert jnp.allclose(out, ref, atol=1e-5, rtol=1e-5), "mismatch vs reference"

    print("KERNEL_OK")
</pallas_src>

<mosaic_0001>
module attributes {stable_mosaic.version = 11 : i64} {
  func.func @_matmul_kernel_single_k(%arg0: i32, %arg1: i32, %arg2: memref<8x32xf32, #tpu.memory_space<vmem>>, %arg3: memref<32x32xf32, #tpu.memory_space<vmem>>, %arg4: memref<8x32xf32, #tpu.memory_space<vmem>>) attributes {dimension_semantics = [#tpu.dimension_semantics<parallel>, #tpu.dimension_semantics<parallel>], iteration_bounds = array<i64: 1, 1>, scalar_prefetch = 0 : i64, scratch_operands = 0 : i64, tpu.core_type = #tpu.core_type<tc>, window_params = [{transform_indices = @transform_0, window_bounds = array<i64: 8, 32>}, {transform_indices = @transform_1, window_bounds = array<i64: 32, 32>}, {transform_indices = @transform_2, window_bounds = array<i64: 8, 32>}]} {
    %c0 = arith.constant 0 : index
    %c0_0 = arith.constant 0 : index
    %0 = vector.load %arg2[%c0, %c0_0] : memref<8x32xf32, #tpu.memory_space<vmem>>, vector<8x32xf32>
    %c0_1 = arith.constant 0 : index
    %c0_2 = arith.constant 0 : index
    %1 = vector.load %arg3[%c0_1, %c0_2] : memref<32x32xf32, #tpu.memory_space<vmem>>, vector<32x32xf32>
    %cst = arith.constant dense<0.000000e+00> : vector<8x32xf32>
    %2 = tpu.matmul %0, %1, %cst {dimension_numbers = #tpu.dot_dimension_numbers<[1], [0], [0], [1], [0, 0, 1, 1], [], []>} : vector<8x32xf32>, vector<32x32xf32>, vector<8x32xf32> -> vector<8x32xf32>
    %c0_3 = arith.constant 0 : index
    %c0_4 = arith.constant 0 : index
    %3 = vector.load %arg4[%c0_3, %c0_4] : memref<8x32xf32, #tpu.memory_space<vmem>>, vector<8x32xf32>
    tpu.vector_store %arg4[%c0_3, %c0_4], %2 {strides = array<i32>} : memref<8x32xf32, #tpu.memory_space<vmem>>, vector<8x32xf32>,
    return
  }
  func.func @transform_0(%arg0: i32, %arg1: i32) -> (i32, i32) {
    %c0_i32 = arith.constant 0 : i32
    %c0_i32_0 = arith.constant 0 : i32
    return %arg0, %c0_i32 : i32, i32
  }
  func.func @transform_1(%arg0: i32, %arg1: i32) -> (i32, i32) {
    %c0_i32 = arith.constant 0 : i32
    %c0_i32_0 = arith.constant 0 : i32
    return %c0_i32, %arg1 : i32, i32
  }
  func.func @transform_2(%arg0: i32, %arg1: i32) -> (i32, i32) {
    %c0_i32 = arith.constant 0 : i32
    return %arg0, %arg1 : i32, i32
  }
}

</mosaic_0001>

<llo_original>
// kernel: hebbian_forward.1
$region0: #{hebbian_forward.1}
  #allocation0 [shape = 'u32[]', space=smem, size = 0x4, offset = 0x4, fixed_abs, tag = 'smem constant byte address 0x4 - core index']
  #allocation1 [shape = 'u32[144,128]{1,0:T(1,128)}', space=vmem, size = 0x12000, scoped, tag = 'internal scratch']
  %s0 = inlined_call_operand.hbm [shape: f32[8,32], index: 0, kind: input, shape index: {}]
  %s1 = inlined_call_operand.hbm [shape: f32[32,32], index: 1, kind: input, shape index: {}]
  %s2 = inlined_call_operand.hbm [shape: f32[8,32], index: 2, kind: output, shape index: {}]
  %s3 = sld [smem:[#allocation0]]
  $region26: #{hebbian_forward.1} parent=0
    _
  %s5 = ssub.s32 1, %s3
  %s6 = scalar_select 0, %s5, %s3
  $region1: #{hebbian_forward.1} parent=0
    #allocation2 [shape = 'u8[4096]{0}', space=vmem, size = 0x1000, scoped, tag = 'input window, operand 0, single buffered']
    #allocation3 [shape = 's32[1]{0}', space=sflag, size = 0x4, scoped, tag = 'scoped memory for hebbian_forward.1']
    #allocation4 [shape = 's32[1]{0}', space=sflag, size = 0x4, scoped, tag = 'scoped memory for hebbian_forward.1']
    #allocation5 [shape = 'u8[16384]{0}', space=vmem, size = 0x4000, scoped, tag = 'input window, operand 1, single buffered']
    #allocation6 [shape = 's32[1]{0}', space=sflag, size = 0x4, scoped, tag = 'scoped memory for hebbian_forward.1']
    #allocation7 [shape = 'u8[4096]{0}', space=vmem, size = 0x1000, scoped, tag = 'output window, operand 0, single buffered']
    %7 = vsyncpa [#allocation3], 0
    %8 = vsyncpa [#allocation6], 0
    %9 = vsyncpa [#allocation4], 0
    // Predicated region
    $region2: #{hebbian_forward.1} parent=1 // pred_check
      _
    $region3: #{hebbian_forward.1} parent=1 // pred_check_branch
      %11 = sbr.rel (0) target = $region5
    $region4: #{hebbian_forward.1} parent=1 // pred_region
      %s13 = ssub.s32 128, 128
      %14 = vsyncadd [#allocation3], %s13
      %s16 = sshll.u32 [#allocation2], 4
      %s17 = int_to_ptr.vmem [resolvable:$true] %s16
      %19 = dma.hbm_to_vmem [thread:$0]  %s0, 128, %s17, [#allocation3]
    $region5: #{hebbian_forward.1} parent=1 // pred_fallthru
      _
    // Predicated region
    $region6: #{hebbian_forward.1} parent=1 // pred_check
      _
    $region7: #{hebbian_forward.1} parent=1 // pred_check_branch
      %21 = sbr.rel (0) target = $region9
    $region8: #{hebbian_forward.1} parent=1 // pred_region
      %s23 = ssub.s32 512, 512
      %24 = vsyncadd [#allocation6], %s23
      %s25 = sshll.u32 [#allocation5], 4
      %s26 = int_to_ptr.vmem [resolvable:$true] %s25
      %31 = dma.hbm_to_vmem [thread:$0]  %s1, 512, %s26, [#allocation6], 128, 128, 8
    $region9: #{hebbian_forward.1} parent=1 // pred_fallthru
      _
    // Predicated region
    $region10: #{hebbian_forward.1} parent=1 // pred_check
      _
    $region11: #{hebbian_forward.1} parent=1 // pred_check_branch
      %33 = sbr.rel (0) target = $region13
    $region12: #{hebbian_forward.1} parent=1 // pred_region
      %34 = dma.done [#allocation3], 128
    $region13: #{hebbian_forward.1} parent=1 // pred_fallthru
      _
    // Predicated region
    $region14: #{hebbian_forward.1} parent=1 // pred_check
      _
    $region15: #{hebbian_forward.1} parent=1 // pred_check_branch
      %36 = sbr.rel (0) target = $region17
    $region16: #{hebbian_forward.1} parent=1 // pred_region
      %37 = dma.done [#allocation6], 512
    $region17: #{hebbian_forward.1} parent=1 // pred_fallthru
      _
    %v38 = vld [vmem:[#allocation2] sm:$0xff]
    %v39 = vld [vmem:[#allocation5] sm:$0xff]
    %v40 = vld [vmem:[#allocation5 + $0x8] sm:$0xff]
    %v41 = vld [vmem:[#allocation5 + $0x10] sm:$0xff]
    %v42 = vld [vmem:[#allocation5 + $0x18] sm:$0xff]
    %vm43 = vcmask 261120
    %v45 = vsel %vm43, %v38, 0
    %47 = vmatprep.subr.mxu0 0.0
    %48 = vmatpush1.msra.mxu0 0.0
    %49 = vmatprep.subr.mxu0 0.0
    %50 = vmatpush1.msra.mxu0 0.0
    %51 = vmatprep.subr.mxu0 0.0
    %52 = vmatpush1.msra.mxu0 0.0
    %53 = vmatprep.subr.mxu0 0.0
    %54 = vmatpush1.msra.mxu0 0.0
    %55 = vmatprep.subr.mxu0 0.0
    %56 = vmatpush1.msra.mxu0 0.0
    %57 = vmatprep.subr.mxu0 0.0
    %58 = vmatpush1.msra.mxu0 0.0
    %59 = vmatprep.subr.mxu0 0.0
    %60 = vmatpush1.msra.mxu0 0.0
    %61 = vmatprep.subr.mxu0 0.0
    %62 = vmatpush1.msra.mxu0 0.0
    %63 = vmatprep.subr.mxu0 0.0
    %64 = vmatpush1.msra.mxu0 0.0
    %65 = vmatprep.subr.mxu0 0.0
    %66 = vmatpush1.msra.mxu0 0.0
    %67 = vmatprep.subr.mxu0 0.0
    %68 = vmatpush1.msra.mxu0 0.0
    %69 = vmatprep.subr.mxu0 0.0
    %70 = vmatpush1.msra.mxu0 0.0
    %71 = vmatprep.subr.mxu0 0.0
    %72 = vmatpush1.msra.mxu0 %v42
    %73 = vmatprep.subr.mxu0 0.0
    %74 = vmatpush1.msra.mxu0 %v41
    %75 = vmatprep.subr.mxu0 0.0
    %76 = vmatpush1.msra.mxu0 %v40
    %77 = vmatprep.subr.mxu0 0.0
    %78 = vmatpush1.msra.mxu0 %v39
    %79 = vmatprep.subr.mxu0 0.0
    %80 = vmatpush2.msra.mxu0 0.0
    %81 = vmatprep.subr.mxu0 0.0
    %82 = vmatpush2.msra.mxu0 0.0
    %83 = vmatprep.subr.mxu0 0.0
    %84 = vmatpush2.msra.mxu0 0.0
    %85 = vmatprep.subr.mxu0 0.0
    %86 = vmatpush2.msra.mxu0 0.0
    %87 = vmatprep.subr.mxu0 0.0
    %88 = vmatpush2.msra.mxu0 0.0
    %89 = vmatprep.subr.mxu0 0.0
    %90 = vmatpush2.msra.mxu0 0.0
    %91 = vmatprep.subr.mxu0 0.0
    %92 = vmatpush2.msra.mxu0 0.0
    %93 = vmatprep.subr.mxu0 0.0
    %94 = vmatpush2.msra.mxu0 0.0
    %95 = vmatprep.subr.mxu0 0.0
    %96 = vmatpush2.msra.mxu0 0.0
    %97 = vmatprep.subr.mxu0 0.0
    %98 = vmatpush2.msra.mxu0 0.0
    %99 = vmatprep.subr.mxu0 0.0
    %100 = vmatpush2.msra.mxu0 0.0
    %101 = vmatprep.subr.mxu0 0.0
    %102 = vmatpush2.msra.mxu0 0.0
    %103 = vmatprep.subr.mxu0 0.0
    %104 = vmatpush2.msra.mxu0 0.0
    %105 = vmatprep.subr.mxu0 0.0
    %106 = vmatpush2.msra.mxu0 0.0
    %107 = vmatprep.subr.mxu0 0.0
    %108 = vmatpush2.msra.mxu0 0.0
    %109 = vmatprep.subr.mxu0 0.0
    %110 = vmatpush2.msra.mxu0 0.0
    %111 = vmatprep.mubr.f32.mxu0 0.0
    %112 = vmatmul.mubr.f32.gmra.mxu0 %v45
    %v113 = vpop.f32.mrf.mxu0
    %v114 = vadd.f32 0.0, %v113
    %v115 = vpop.f32.mrf.mxu0
    %116 = vdwg.mxu0
    %117 = vst.msk [vmem:[#allocation7] sm:$0xff] %vm43, %v114
    // Predicated region
    $region18: #{hebbian_forward.1} parent=1 // pred_check
      _
    $region19: #{hebbian_forward.1} parent=1 // pred_check_branch
      %119 = sbr.rel (0) target = $region21
    $region20: #{hebbian_forward.1} parent=1 // pred_region
      %s121 = ssub.s32 128, 128
      %122 = vsyncadd [#allocation4], %s121
      %s124 = sshll.u32 [#allocation7], 4
      %s125 = int_to_ptr.vmem [resolvable:$true] %s124
      %127 = dma.vmem_to_hbm [thread:$0]  %s125, 128, %s2, [#allocation4]
    $region21: #{hebbian_forward.1} parent=1 // pred_fallthru
      _
    // Predicated region
    $region22: #{hebbian_forward.1} parent=1 // pred_check
      _
    $region23: #{hebbian_forward.1} parent=1 // pred_check_branch
      %129 = sbr.rel (0) target = $region25
    $region24: #{hebbian_forward.1} parent=1 // pred_region
      %130 = dma.done [#allocation4], 128
    $region25: #{hebbian_forward.1} parent=1 // pred_fallthru
      _
    %131 = vsyncpa [#allocation3], 1
    %132 = vsyncpa [#allocation6], 1
    %133 = vsyncpa [#allocation4], 1

</llo_original>
